<compile_context>
chip_gen: v7x
topology: tpu7x:2x2x1
jax: 0.10.0
libtpu: 0.0.40
codegen_flags: <defaults>
</compile_context>

<pallas_src>
import functools

import jax
import jax.numpy as jnp
from jax.experimental import pallas as pl
from jax.experimental.pallas import tpu as pltpu


def _round_up(n, m):
    return ((n + m - 1) // m) * m


def _cplx_mlp_kernel(num_layers, x_ref, *refs):
    """Fused complex MLP forward on one batch tile (feature-major layout).

    refs = (W0, b0, W1, b1, ..., W{L-1}, b{L-1}, out_ref)
    All weights are the real block form [[Wr, -Wi], [Wi, Wr]] (layer 0 is the
    real-input form [W0r; W0i]); activations are (2*features, TM) with the
    real part stacked above the imaginary part and the batch tile on lanes.
    """
    out_ref = refs[-1]
    p = refs[:-1]

    # Layer 0 (ComplexLinearFirst): real input -> stacked complex output.
    # Normalization already folded into (W0, b0) on the host.
    h = jnp.dot(p[0][...], x_ref[...],
                preferred_element_type=jnp.float32) + p[1][...]
    if num_layers > 1:
        h = jnp.tanh(h)

    # Middle layers + final layer (ComplexLinearMidden); no activation on last.
    for l in range(1, num_layers):
        w = p[2 * l][...]
        b = p[2 * l + 1][...]
        h = jnp.dot(w, h, preferred_element_type=jnp.float32) + b
        if l < num_layers - 1:
            h = jnp.tanh(h)

    out_ref[...] = h.astype(out_ref.dtype)


def complex_value_dnn_forward(x, lb, ub, params, *, block_batch=1024):
    """Fused ComlexValueDNN forward.

    x: (N, d_in) float32
    lb, ub: (d_in,) float32
    params[l] = (Wr, Wi, br, bi) with Wr/Wi in torch-native (out, in) layout.
    Returns (out_real, out_imag), each (N, d_out) float32.
    """
    n, d_in = x.shape
    num_layers = len(params)
    d_out = params[-1][0].shape[0]

    # Batch tile: multiple of 128 lanes; pad N up to a multiple of it.
    tm = _round_up(min(block_batch, _round_up(max(n, 1), 128)), 128)
    n_pad = _round_up(n, tm)

    # Feature-major input (d_in, n_pad): batch on the lane axis.
    x_fm = x.astype(jnp.float32).T
    if n_pad != n:
        x_fm = jnp.pad(x_fm, ((0, 0), (0, n_pad - n)))

    # Fold (x - lb) / (ub - lb) into layer 0.
    lb = lb.astype(jnp.float32)
    ub = ub.astype(jnp.float32)
    scale = 1.0 / (ub - lb)          # (d_in,)
    shift = lb * scale               # (d_in,)

    args = [x_fm]
    in_specs = [pl.BlockSpec((d_in, tm), lambda i: (0, i))]

    for l, (wr, wi, br, bi) in enumerate(params):
        wr = wr.astype(jnp.float32)
        wi = wi.astype(jnp.float32)
        br = br.astype(jnp.float32)
        bi = bi.astype(jnp.float32)
        if l == 0:
            # Fold normalization, then stack for the real-input first layer:
            #   [hr; hi] = [W0r; W0i] @ x + [b0r; b0i]
            br = br - wr @ shift
            bi = bi - wi @ shift
            wr = wr * scale[None, :]
            wi = wi * scale[None, :]
            w_big = jnp.concatenate([wr, wi], axis=0)              # (2*out, in)
        else:
            # Complex multiply as one real block matmul:
            #   [hr'; hi'] = [[Wr, -Wi], [Wi, Wr]] @ [hr; hi] + [br; bi]
            top = jnp.concatenate([wr, -wi], axis=1)
            bot = jnp.concatenate([wi, wr], axis=1)
            w_big = jnp.concatenate([top, bot], axis=0)            # (2*out, 2*in)
        b_big = jnp.concatenate([br, bi], axis=0).reshape(-1, 1)   # (2*out, 1)
        for a in (w_big, b_big):
            args.append(a)
            # Constant index_map -> stays resident in VMEM across grid steps.
            in_specs.append(pl.BlockSpec(a.shape, lambda i: (0, 0)))

    kernel = functools.partial(_cplx_mlp_kernel, num_layers)

    out = pl.pallas_call(
        kernel,
        out_shape=jax.ShapeDtypeStruct((2 * d_out, n_pad), jnp.float32),
        grid=(n_pad // tm,),
        in_specs=in_specs,
        out_specs=pl.BlockSpec((2 * d_out, tm), lambda i: (0, i)),
        compiler_params=pltpu.CompilerParams(
            dimension_semantics=("parallel",)),
    )(*args)

    # Split stacked real/imag, back to batch-major (N, d_out); strip padding.
    out_r = out[:d_out, :n].T
    out_i = out[d_out:, :n].T
    return out_r, out_i


def init_params(key, layers):
    """PyTorch-Linear-style init U(-1/sqrt(fan_in), 1/sqrt(fan_in)) for the
    real and imaginary weight/bias pairs of every complex layer."""
    params = []
    for i in range(len(layers) - 1):
        fan_in, fan_out = layers[i], layers[i + 1]
        key, kwr, kwi, kbr, kbi = jax.random.split(key, 5)
        bound = 1.0 / float(fan_in) ** 0.5
        wr = jax.random.uniform(kwr, (fan_out, fan_in), jnp.float32, -bound, bound)
        wi = jax.random.uniform(kwi, (fan_out, fan_in), jnp.float32, -bound, bound)
        br = jax.random.uniform(kbr, (fan_out,), jnp.float32, -bound, bound)
        bi = jax.random.uniform(kbi, (fan_out,), jnp.float32, -bound, bound)
        params.append((wr, wi, br, bi))
    return params


def reference_forward(x, lb, ub, params):
    """Pure-JAX reference mirroring the (assumed) PyTorch module semantics."""
    h = (x - lb[None, :]) / (ub[None, :] - lb[None, :])
    wr, wi, br, bi = params[0]
    hr = h @ wr.T + br[None, :]
    hi = h @ wi.T + bi[None, :]
    num_layers = len(params)
    if num_layers > 1:
        hr, hi = jnp.tanh(hr), jnp.tanh(hi)
    for l in range(1, num_layers):
        wr, wi, br, bi = params[l]
        nr = hr @ wr.T - hi @ wi.T + br[None, :]
        ni = hr @ wi.T + hi @ wr.T + bi[None, :]
        if l < num_layers - 1:
            nr, ni = jnp.tanh(nr), jnp.tanh(ni)
        hr, hi = nr, ni
    return hr, hi


if __name__ == "__main__":
    # PINN-style configuration: 2 inputs (x, t), tanh hidden layers, 1 complex output.
    layers = [2, 32, 32, 32, 1]
    batch = 300   # > one lane tile and not a multiple of it: exercises grid + padding

    key = jax.random.PRNGKey(0)
    key, kx = jax.random.split(key)

    lb = jnp.array([-1.0, 0.0], dtype=jnp.float32)
    ub = jnp.array([1.0, 1.0], dtype=jnp.float32)

    # Sample inputs inside [lb, ub].
    u = jax.random.uniform(kx, (batch, layers[0]), jnp.float32)
    x = lb[None, :] + u * (ub - lb)[None, :]

    params = init_params(jax.random.PRNGKey(0), layers)

    # Small block_batch so the demo runs a multi-step grid; default (1024) is
    # the production setting for large collocation batches.
    out_r, out_i = complex_value_dnn_forward(x, lb, ub, params, block_batch=128)
    out_r = jax.block_until_ready(out_r)
    out_i = jax.block_until_ready(out_i)

    ref_r, ref_i = reference_forward(x, lb, ub, params)
    assert out_r.shape == (batch, layers[-1])
    assert out_i.shape == (batch, layers[-1])
    err = max(float(jnp.max(jnp.abs(out_r - ref_r))),
              float(jnp.max(jnp.abs(out_i - ref_i))))
    assert err < 2e-5, f"mismatch: max err {err}"

    print("KERNEL_OK")
</pallas_src>

<mosaic_0001>
module attributes {stable_mosaic.version = 11 : i64} {
  func.func @_cplx_mlp_kernel(%arg0: i32, %arg1: memref<2x128xf32, #tpu.memory_space<vmem>>, %arg2: memref<64x2xf32, #tpu.memory_space<vmem>>, %arg3: memref<64x1xf32, #tpu.memory_space<vmem>>, %arg4: memref<64x64xf32, #tpu.memory_space<vmem>>, %arg5: memref<64x1xf32, #tpu.memory_space<vmem>>, %arg6: memref<64x64xf32, #tpu.memory_space<vmem>>, %arg7: memref<64x1xf32, #tpu.memory_space<vmem>>, %arg8: memref<2x64xf32, #tpu.memory_space<vmem>>, %arg9: memref<2x1xf32, #tpu.memory_space<vmem>>, %arg10: memref<2x128xf32, #tpu.memory_space<vmem>>) attributes {dimension_semantics = [#tpu.dimension_semantics<parallel>], iteration_bounds = array<i64: 3>, scalar_prefetch = 0 : i64, scratch_operands = 0 : i64, tpu.core_type = #tpu.core_type<tc>, window_params = [{transform_indices = @transform_0, window_bounds = array<i64: 2, 128>}, {pipeline_mode = #tpu.pipeline_mode<synchronous>, transform_indices = @transform_1, window_bounds = array<i64: 64, 2>}, {pipeline_mode = #tpu.pipeline_mode<synchronous>, transform_indices = @transform_2, window_bounds = array<i64: 64, 1>}, {pipeline_mode = #tpu.pipeline_mode<synchronous>, transform_indices = @transform_3, window_bounds = array<i64: 64, 64>}, {pipeline_mode = #tpu.pipeline_mode<synchronous>, transform_indices = @transform_4, window_bounds = array<i64: 64, 1>}, {pipeline_mode = #tpu.pipeline_mode<synchronous>, transform_indices = @transform_5, window_bounds = array<i64: 64, 64>}, {pipeline_mode = #tpu.pipeline_mode<synchronous>, transform_indices = @transform_6, window_bounds = array<i64: 64, 1>}, {pipeline_mode = #tpu.pipeline_mode<synchronous>, transform_indices = @transform_7, window_bounds = array<i64: 2, 64>}, {pipeline_mode = #tpu.pipeline_mode<synchronous>, transform_indices = @transform_8, window_bounds = array<i64: 2, 1>}, {transform_indices = @transform_9, window_bounds = array<i64: 2, 128>}]} {
    %c0 = arith.constant 0 : index
    %c0_0 = arith.constant 0 : index
    %0 = vector.load %arg2[%c0, %c0_0] : memref<64x2xf32, #tpu.memory_space<vmem>>, vector<64x2xf32>
    %c0_1 = arith.constant 0 : index
    %c0_2 = arith.constant 0 : index
    %1 = vector.load %arg1[%c0_1, %c0_2] : memref<2x128xf32, #tpu.memory_space<vmem>>, vector<2x128xf32>
    %cst = arith.constant dense<0.000000e+00> : vector<64x128xf32>
    %2 = tpu.matmul %0, %1, %cst {dimension_numbers = #tpu.dot_dimension_numbers<[1], [0], [0], [1], [0, 0, 1, 1], [], []>} : vector<64x2xf32>, vector<2x128xf32>, vector<64x128xf32> -> vector<64x128xf32>
    %c0_3 = arith.constant 0 : index
    %c0_4 = arith.constant 0 : index
    %3 = vector.load %arg3[%c0_3, %c0_4] : memref<64x1xf32, #tpu.memory_space<vmem>>, vector<64x1xf32>
    %4 = vector.broadcast %3 : vector<64x1xf32> to vector<64x128xf32>
    %5 = arith.addf %2, %4 : vector<64x128xf32>
    %6 = math.tanh %5 : vector<64x128xf32>
    %c0_5 = arith.constant 0 : index
    %c0_6 = arith.constant 0 : index
    %7 = vector.load %arg4[%c0_5, %c0_6] : memref<64x64xf32, #tpu.memory_space<vmem>>, vector<64x64xf32>
    %c0_7 = arith.constant 0 : index
    %c0_8 = arith.constant 0 : index
    %8 = vector.load %arg5[%c0_7, %c0_8] : memref<64x1xf32, #tpu.memory_space<vmem>>, vector<64x1xf32>
    %cst_9 = arith.constant dense<0.000000e+00> : vector<64x128xf32>
    %9 = tpu.matmul %7, %6, %cst_9 {dimension_numbers = #tpu.dot_dimension_numbers<[1], [0], [0], [1], [0, 0, 1, 1], [], []>} : vector<64x64xf32>, vector<64x128xf32>, vector<64x128xf32> -> vector<64x128xf32>
    %10 = vector.broadcast %8 : vector<64x1xf32> to vector<64x128xf32>
    %11 = arith.addf %9, %10 : vector<64x128xf32>
    %12 = math.tanh %11 : vector<64x128xf32>
    %c0_10 = arith.constant 0 : index
    %c0_11 = arith.constant 0 : index
    %13 = vector.load %arg6[%c0_10, %c0_11] : memref<64x64xf32, #tpu.memory_space<vmem>>, vector<64x64xf32>
    %c0_12 = arith.constant 0 : index
    %c0_13 = arith.constant 0 : index
    %14 = vector.load %arg7[%c0_12, %c0_13] : memref<64x1xf32, #tpu.memory_space<vmem>>, vector<64x1xf32>
    %cst_14 = arith.constant dense<0.000000e+00> : vector<64x128xf32>
    %15 = tpu.matmul %13, %12, %cst_14 {dimension_numbers = #tpu.dot_dimension_numbers<[1], [0], [0], [1], [0, 0, 1, 1], [], []>} : vector<64x64xf32>, vector<64x128xf32>, vector<64x128xf32> -> vector<64x128xf32>
    %16 = vector.broadcast %14 : vector<64x1xf32> to vector<64x128xf32>
    %17 = arith.addf %15, %16 : vector<64x128xf32>
    %18 = math.tanh %17 : vector<64x128xf32>
    %c0_15 = arith.constant 0 : index
    %c0_16 = arith.constant 0 : index
    %19 = vector.load %arg8[%c0_15, %c0_16] : memref<2x64xf32, #tpu.memory_space<vmem>>, vector<2x64xf32>
    %c0_17 = arith.constant 0 : index
    %c0_18 = arith.constant 0 : index
    %20 = vector.load %arg9[%c0_17, %c0_18] : memref<2x1xf32, #tpu.memory_space<vmem>>, vector<2x1xf32>
    %cst_19 = arith.constant dense<0.000000e+00> : vector<2x128xf32>
    %21 = tpu.matmul %19, %18, %cst_19 {dimension_numbers = #tpu.dot_dimension_numbers<[1], [0], [0], [1], [0, 0, 1, 1], [], []>} : vector<2x64xf32>, vector<64x128xf32>, vector<2x128xf32> -> vector<2x128xf32>
    %22 = vector.broadcast %20 : vector<2x1xf32> to vector<2x128xf32>
    %23 = arith.addf %21, %22 : vector<2x128xf32>
    %c0_20 = arith.constant 0 : index
    %c0_21 = arith.constant 0 : index
    %24 = vector.load %arg10[%c0_20, %c0_21] : memref<2x128xf32, #tpu.memory_space<vmem>>, vector<2x128xf32>
    tpu.vector_store %arg10[%c0_20, %c0_21], %23 {strides = array<i32>} : memref<2x128xf32, #tpu.memory_space<vmem>>, vector<2x128xf32>,
    return
  }
  func.func @transform_0(%arg0: i32) -> (i32, i32) {
    %c0_i32 = arith.constant 0 : i32
    %c0_i32_0 = arith.constant 0 : i32
    return %c0_i32, %arg0 : i32, i32
  }
  func.func @transform_1(%arg0: i32) -> (i32, i32) {
    %c0_i32 = arith.constant 0 : i32
    %c0_i32_0 = arith.constant 0 : i32
    %c0_i32_1 = arith.constant 0 : i32
    return %c0_i32, %c0_i32_0 : i32, i32
  }
  func.func @transform_2(%arg0: i32) -> (i32, i32) {
    %c0_i32 = arith.constant 0 : i32
    %c0_i32_0 = arith.constant 0 : i32
    %c0_i32_1 = arith.constant 0 : i32
    return %c0_i32, %c0_i32_0 : i32, i32
  }
  func.func @transform_3(%arg0: i32) -> (i32, i32) {
    %c0_i32 = arith.constant 0 : i32
    %c0_i32_0 = arith.constant 0 : i32
    %c0_i32_1 = arith.constant 0 : i32
    return %c0_i32, %c0_i32_0 : i32, i32
  }
  func.func @transform_4(%arg0: i32) -> (i32, i32) {
    %c0_i32 = arith.constant 0 : i32
    %c0_i32_0 = arith.constant 0 : i32
    %c0_i32_1 = arith.constant 0 : i32
    return %c0_i32, %c0_i32_0 : i32, i32
  }
  func.func @transform_5(%arg0: i32) -> (i32, i32) {
    %c0_i32 = arith.constant 0 : i32
    %c0_i32_0 = arith.constant 0 : i32
    %c0_i32_1 = arith.constant 0 : i32
    return %c0_i32, %c0_i32_0 : i32, i32
  }
  func.func @transform_6(%arg0: i32) -> (i32, i32) {
    %c0_i32 = arith.constant 0 : i32
    %c0_i32_0 = arith.constant 0 : i32
    %c0_i32_1 = arith.constant 0 : i32
    return %c0_i32, %c0_i32_0 : i32, i32
  }
  func.func @transform_7(%arg0: i32) -> (i32, i32) {
    %c0_i32 = arith.constant 0 : i32
    %c0_i32_0 = arith.constant 0 : i32
    %c0_i32_1 = arith.constant 0 : i32
    return %c0_i32, %c0_i32_0 : i32, i32
  }
  func.func @transform_8(%arg0: i32) -> (i32, i32) {
    %c0_i32 = arith.constant 0 : i32
    %c0_i32_0 = arith.constant 0 : i32
    %c0_i32_1 = arith.constant 0 : i32
    return %c0_i32, %c0_i32_0 : i32, i32
  }
  func.func @transform_9(%arg0: i32) -> (i32, i32) {
    %c0_i32 = arith.constant 0 : i32
    %c0_i32_0 = arith.constant 0 : i32
    return %c0_i32, %arg0 : i32, i32
  }
}

</mosaic_0001>

<llo_original>
// kernel: tpu_custom_call.1
$region0: #{tpu_custom_call.1}
  #allocation0 [shape = 'u32[]', space=smem, size = 0x4, offset = 0x4, fixed_abs, tag = 'smem constant byte address 0x4 - core index']
  #allocation1 [shape = 'u32[144,128]{1,0:T(1,128)}', space=vmem, size = 0x12000, scoped, tag = 'internal scratch']
  %s0 = inlined_call_operand.vmem [shape: f32[2,384], index: 0, kind: input, shape index: {}]
  %s1 = inlined_call_operand.vmem [shape: f32[64,2], index: 1, kind: input, shape index: {}]
  %s2 = inlined_call_operand.vmem [shape: f32[64,1], index: 2, kind: input, shape index: {}]
  %s3 = inlined_call_operand.vmem [shape: f32[64,64], index: 3, kind: input, shape index: {}]
  %s4 = inlined_call_operand.vmem [shape: f32[64,1], index: 4, kind: input, shape index: {}]
  %s5 = inlined_call_operand.vmem [shape: f32[64,64], index: 5, kind: input, shape index: {}]
  %s6 = inlined_call_operand.vmem [shape: f32[64,1], index: 6, kind: input, shape index: {}]
  %s7 = inlined_call_operand.vmem [shape: f32[2,64], index: 7, kind: input, shape index: {}]
  %s8 = inlined_call_operand.vmem [shape: f32[2,1], index: 8, kind: input, shape index: {}]
  %s9 = inlined_call_operand.hbm [shape: f32[2,384], index: 9, kind: output, shape index: {}]
  %s10 = sld [smem:[#allocation0]]
  $region69: #{tpu_custom_call.1} parent=0
    _
  %s12 = ssub.s32 1, %s10
  %s13 = scalar_select 0, %s12, %s10
  $region1: #{tpu_custom_call.1} parent=0
    #allocation2 [shape = 'u8[2048]{0}', space=vmem, size = 0x800, scoped, tag = 'output window, operand 0']
    #allocation3 [shape = 's32[2]{0}', space=sflag, size = 0x8, scoped, tag = 'scoped memory for tpu_custom_call.1']
    %14 = vsyncpa [#allocation3], 0
    %s15 = scalar_lea.sflag [#allocation3], 1
    %16 = vsyncpa %s15, 0
    loop: start=0, step=1, limit=5
    $region2: #{tpu_custom_call.1} parent=1 // loop_pre_header
      _
    $region3: #{tpu_custom_call.1} parent=1 // loop_header
      %s18 = sphi 0, %s22
      %p19 = scmp.ge.s32.totalorder %s18, 5
      %s28 = sphi 0, %s30
      %s31 = sphi 0, %s28
      %s32 = sphi 0, %s31
      %s48 = sphi 0, %s32
      %s52 = sphi 0, %s52
      %s54 = sphi 0, %s52
      %s55 = sphi 0, %s54
      %s69 = sphi 0, %s55
      %s73 = sphi 0, %s73
      %s75 = sphi 0, %s73
      %s76 = sphi 0, %s75
      %s90 = sphi 0, %s76
      %s94 = sphi 0, %s94
      %s96 = sphi 0, %s94
      %s97 = sphi 0, %s96
      %s111 = sphi 0, %s97
      %s115 = sphi 0, %s115
      %s117 = sphi 0, %s115
      %s118 = sphi 0, %s117
      %s132 = sphi 0, %s118
      %s136 = sphi 0, %s136
      %s138 = sphi 0, %s136
      %s139 = sphi 0, %s138
      %s153 = sphi 0, %s139
      %s157 = sphi 0, %s157
      %s159 = sphi 0, %s157
      %s160 = sphi 0, %s159
      %s174 = sphi 0, %s160
      %s178 = sphi 0, %s178
      %s180 = sphi 0, %s178
      %s181 = sphi 0, %s180
      %s195 = sphi 0, %s181
      %s199 = sphi 0, %s199
      %s201 = sphi 0, %s199
      %s202 = sphi 0, %s201
      %s216 = sphi 0, %s202
      %s222 = sphi 0, %s224
      %s225 = sphi 0, %s222
      %s226 = sphi 0, %s225
      %s242 = sphi 0, %s226
    $region4: #{tpu_custom_call.1} parent=1 // loop_header_branch
      %21 = sbr.rel (%p19) target = $region8
    $region5: #{tpu_custom_call.1} parent=1 // loop_body
      %s23 = ssub.s32 %s18, 1
      %s24 = ssub.s32 %s18, 2
      %s25 = sadd.s32 %s18, 1
      %s26 = ssub.s32 %s18, %s25
      %p27 = scmp.eq.s32.totalorder %s26, 0
      %s29 = sadd.s32 %s28, 1
      %s30 = scalar_select %p27, %s28, %s29
      %p33 = pneg %p27
      %p34 = scmp.eq.s32.totalorder %s18, 2
      %p35 = por %p33, %p34
      %p36 = scmp.ne.s32.totalorder %s28, %s31
      %p37 = scmp.eq.s32.totalorder %s18, 0
      %p38 = por %p36, %p37
      %p39 = scmp.ne.s32.totalorder %s28, %s31
      %p40 = scmp.eq.s32.totalorder %s23, 2
      %p41 = por %p39, %p40
      %p42 = scmp.ne.s32.totalorder %s31, %s32
      %p43 = scmp.eq.s32.totalorder %s23, 0
      %p44 = por %p42, %p43
      %p45 = scmp.ne.s32.totalorder %s31, %s32
      %p46 = scmp.eq.s32.totalorder %s24, 2
      %p47 = por %p45, %p46
      %p49 = scmp.ne.s32.totalorder %s32, %s48
      %p50 = scmp.eq.s32.totalorder %s24, 0
      %p51 = por %p49, %p50
      %s53 = sadd.s32 %s52, 1
      %p56 = scmp.eq.s32.totalorder %s18, 2
      %p57 = scmp.ne.s32.totalorder %s52, %s54
      %p58 = scmp.eq.s32.totalorder %s18, 0
      %p59 = por %p57, %p58
      %p60 = scmp.ne.s32.totalorder %s52, %s54
      %p61 = scmp.eq.s32.totalorder %s23, 2
      %p62 = por %p60, %p61
      %p63 = scmp.ne.s32.totalorder %s54, %s55
      %p64 = scmp.eq.s32.totalorder %s23, 0
      %p65 = por %p63, %p64
      %p66 = scmp.ne.s32.totalorder %s54, %s55
      %p67 = scmp.eq.s32.totalorder %s24, 2
      %p68 = por %p66, %p67
      %p70 = scmp.ne.s32.totalorder %s55, %s69
      %p71 = scmp.eq.s32.totalorder %s24, 0
      %p72 = por %p70, %p71
      %s74 = sadd.s32 %s73, 1
      %p77 = scmp.eq.s32.totalorder %s18, 2
      %p78 = scmp.ne.s32.totalorder %s73, %s75
      %p79 = scmp.eq.s32.totalorder %s18, 0
      %p80 = por %p78, %p79
      %p81 = scmp.ne.s32.totalorder %s73, %s75
      %p82 = scmp.eq.s32.totalorder %s23, 2
      %p83 = por %p81, %p82
      %p84 = scmp.ne.s32.totalorder %s75, %s76
      %p85 = scmp.eq.s32.totalorder %s23, 0
      %p86 = por %p84, %p85
      %p87 = scmp.ne.s32.totalorder %s75, %s76
      %p88 = scmp.eq.s32.totalorder %s24, 2
      %p89 = por %p87, %p88
      %p91 = scmp.ne.s32.totalorder %s76, %s90
      %p92 = scmp.eq.s32.totalorder %s24, 0
      %p93 = por %p91, %p92
      %s95 = sadd.s32 %s94, 1
      %p98 = scmp.eq.s32.totalorder %s18, 2
      %p99 = scmp.ne.s32.totalorder %s94, %s96
      %p100 = scmp.eq.s32.totalorder %s18, 0
      %p101 = por %p99, %p100
      %p102 = scmp.ne.s32.totalorder %s94, %s96
      %p103 = scmp.eq.s32.totalorder %s23, 2
      %p104 = por %p102, %p103
      %p105 = scmp.ne.s32.totalorder %s96, %s97
      %p106 = scmp.eq.s32.totalorder %s23, 0
      %p107 = por %p105, %p106
      %p108 = scmp.ne.s32.totalorder %s96, %s97
      %p109 = scmp.eq.s32.totalorder %s24, 2
      %p110 = por %p108, %p109
      %p112 = scmp.ne.s32.totalorder %s97, %s111
      %p113 = scmp.eq.s32.totalorder %s24, 0
      %p114 = por %p112, %p113
      %s116 = sadd.s32 %s115, 1
      %p119 = scmp.eq.s32.totalorder %s18, 2
      %p120 = scmp.ne.s32.totalorder %s115, %s117
      %p121 = scmp.eq.s32.totalorder %s18, 0
      %p122 = por %p120, %p121
      %p123 = scmp.ne.s32.totalorder %s115, %s117
      %p124 = scmp.eq.s32.totalorder %s23, 2
      %p125 = por %p123, %p124
      %p126 = scmp.ne.s32.totalorder %s117, %s118
      %p127 = scmp.eq.s32.totalorder %s23, 0
      %p128 = por %p126, %p127
      %p129 = scmp.ne.s32.totalorder %s117, %s118
      %p130 = scmp.eq.s32.totalorder %s24, 2
      %p131 = por %p129, %p130
      %p133 = scmp.ne.s32.totalorder %s118, %s132
      %p134 = scmp.eq.s32.totalorder %s24, 0
      %p135 = por %p133, %p134
      %s137 = sadd.s32 %s136, 1
      %p140 = scmp.eq.s32.totalorder %s18, 2
      %p141 = scmp.ne.s32.totalorder %s136, %s138
      %p142 = scmp.eq.s32.totalorder %s18, 0
      %p143 = por %p141, %p142
      %p144 = scmp.ne.s32.totalorder %s136, %s138
      %p145 = scmp.eq.s32.totalorder %s23, 2
      %p146 = por %p144, %p145
      %p147 = scmp.ne.s32.totalorder %s138, %s139
      %p148 = scmp.eq.s32.totalorder %s23, 0
      %p149 = por %p147, %p148
      %p150 = scmp.ne.s32.totalorder %s138, %s139
      %p151 = scmp.eq.s32.totalorder %s24, 2
      %p152 = por %p150, %p151
      %p154 = scmp.ne.s32.totalorder %s139, %s153
      %p155 = scmp.eq.s32.totalorder %s24, 0
      %p156 = por %p154, %p155
      %s158 = sadd.s32 %s157, 1
      %p161 = scmp.eq.s32.totalorder %s18, 2
      %p162 = scmp.ne.s32.totalorder %s157, %s159
      %p163 = scmp.eq.s32.totalorder %s18, 0
      %p164 = por %p162, %p163
      %p165 = scmp.ne.s32.totalorder %s157, %s159
      %p166 = scmp.eq.s32.totalorder %s23, 2
      %p167 = por %p165, %p166
      %p168 = scmp.ne.s32.totalorder %s159, %s160
      %p169 = scmp.eq.s32.totalorder %s23, 0
      %p170 = por %p168, %p169
      %p171 = scmp.ne.s32.totalorder %s159, %s160
      %p172 = scmp.eq.s32.totalorder %s24, 2
      %p173 = por %p171, %p172
      %p175 = scmp.ne.s32.totalorder %s160, %s174
      %p176 = scmp.eq.s32.totalorder %s24, 0
      %p177 = por %p175, %p176
      %s179 = sadd.s32 %s178, 1
      %p182 = scmp.eq.s32.totalorder %s18, 2
      %p183 = scmp.ne.s32.totalorder %s178, %s180
      %p184 = scmp.eq.s32.totalorder %s18, 0
      %p185 = por %p183, %p184
      %p186 = scmp.ne.s32.totalorder %s178, %s180
      %p187 = scmp.eq.s32.totalorder %s23, 2
      %p188 = por %p186, %p187
      %p189 = scmp.ne.s32.totalorder %s180, %s181
      %p190 = scmp.eq.s32.totalorder %s23, 0
      %p191 = por %p189, %p190
      %p192 = scmp.ne.s32.totalorder %s180, %s181
      %p193 = scmp.eq.s32.totalorder %s24, 2
      %p194 = por %p192, %p193
      %p196 = scmp.ne.s32.totalorder %s181, %s195
      %p197 = scmp.eq.s32.totalorder %s24, 0
      %p198 = por %p196, %p197
      %s200 = sadd.s32 %s199, 1
      %p203 = scmp.eq.s32.totalorder %s18, 2
      %p204 = scmp.ne.s32.totalorder %s199, %s201
      %p205 = scmp.eq.s32.totalorder %s18, 0
      %p206 = por %p204, %p205
      %p207 = scmp.ne.s32.totalorder %s199, %s201
      %p208 = scmp.eq.s32.totalorder %s23, 2
      %p209 = por %p207, %p208
      %p210 = scmp.ne.s32.totalorder %s201, %s202
      %p211 = scmp.eq.s32.totalorder %s23, 0
      %p212 = por %p210, %p211
      %p213 = scmp.ne.s32.totalorder %s201, %s202
      %p214 = scmp.eq.s32.totalorder %s24, 2
      %p215 = por %p213, %p214
      %p217 = scmp.ne.s32.totalorder %s202, %s216
      %p218 = scmp.eq.s32.totalorder %s24, 0
      %p219 = por %p217, %p218
      %s220 = ssub.s32 %s18, %s25
      %p221 = scmp.eq.s32.totalorder %s220, 0
      %s223 = sadd.s32 %s222, 1
      %s224 = scalar_select %p221, %s222, %s223
      %p227 = pneg %p221
      %p228 = scmp.eq.s32.totalorder %s18, 2
      %p229 = por %p227, %p228
      %p230 = scmp.ne.s32.totalorder %s222, %s225
      %p231 = scmp.eq.s32.totalorder %s18, 0
      %p232 = por %p230, %p231
      %p233 = scmp.ne.s32.totalorder %s222, %s225
      %p234 = scmp.eq.s32.totalorder %s23, 2
      %p235 = por %p233, %p234
      %p236 = scmp.ne.s32.totalorder %s225, %s226
      %p237 = scmp.eq.s32.totalorder %s23, 0
      %p238 = por %p236, %p237
      %p239 = scmp.ne.s32.totalorder %s225, %s226
      %p240 = scmp.eq.s32.totalorder %s24, 2
      %p241 = por %p239, %p240
      %p243 = scmp.ne.s32.totalorder %s226, %s242
      %p244 = scmp.eq.s32.totalorder %s24, 0
      %p245 = por %p243, %p244
      %p246 = scmp.le.s32.totalorder 1, %s18
      %p247 = scmp.lt.s32.totalorder %s18, 4
      %p248 = pnand %p246, %p247
      %p249 = pneg %p248
      // Predicated region
      $region9: #{tpu_custom_call.1} parent=5 // pred_check
        _
      $region10: #{tpu_custom_call.1} parent=5 // pred_check_branch
        %251 = sbr.rel (%p248) target = $region12
      $region11: #{tpu_custom_call.1} parent=5 // pred_region
        %s252 = ssub.s32 %s18, 1
        // Predicated region
        $region13: #{tpu_custom_call.1} parent=11 // pred_check
          %p253 = pneg %p65
        $region14: #{tpu_custom_call.1} parent=11 // pred_check_branch
          %255 = sbr.rel (%p253) target = $region16
        $region15: #{tpu_custom_call.1} parent=11 // pred_region
          _
        $region16: #{tpu_custom_call.1} parent=11 // pred_fallthru
          _
        // Predicated region
        $region17: #{tpu_custom_call.1} parent=11 // pred_check
          %p256 = pneg %p86
        $region18: #{tpu_custom_call.1} parent=11 // pred_check_branch
          %258 = sbr.rel (%p256) target = $region20
        $region19: #{tpu_custom_call.1} parent=11 // pred_region
          _
        $region20: #{tpu_custom_call.1} parent=11 // pred_fallthru
          _
        // Predicated region
        $region21: #{tpu_custom_call.1} parent=11 // pred_check
          %p259 = pneg %p107
        $region22: #{tpu_custom_call.1} parent=11 // pred_check_branch
          %261 = sbr.rel (%p259) target = $region24
        $region23: #{tpu_custom_call.1} parent=11 // pred_region
          _
        $region24: #{tpu_custom_call.1} parent=11 // pred_fallthru
          _
        // Predicated region
        $region25: #{tpu_custom_call.1} parent=11 // pred_check
          %p262 = pneg %p128
        $region26: #{tpu_custom_call.1} parent=11 // pred_check_branch
          %264 = sbr.rel (%p262) target = $region28
        $region27: #{tpu_custom_call.1} parent=11 // pred_region
          _
        $region28: #{tpu_custom_call.1} parent=11 // pred_fallthru
          _
        // Predicated region
        $region29: #{tpu_custom_call.1} parent=11 // pred_check
          %p265 = pneg %p149
        $region30: #{tpu_custom_call.1} parent=11 // pred_check_branch
          %267 = sbr.rel (%p265) target = $region32
        $region31: #{tpu_custom_call.1} parent=11 // pred_region
          _
        $region32: #{tpu_custom_call.1} parent=11 // pred_fallthru
          _
        // Predicated region
        $region33: #{tpu_custom_call.1} parent=11 // pred_check
          %p268 = pneg %p170
        $region34: #{tpu_custom_call.1} parent=11 // pred_check_branch
          %270 = sbr.rel (%p268) target = $region36
        $region35: #{tpu_custom_call.1} parent=11 // pred_region
          _
        $region36: #{tpu_custom_call.1} parent=11 // pred_fallthru
          _
        // Predicated region
        $region37: #{tpu_custom_call.1} parent=11 // pred_check
          %p271 = pneg %p191
        $region38: #{tpu_custom_call.1} parent=11 // pred_check_branch
          %273 = sbr.rel (%p271) target = $region40
        $region39: #{tpu_custom_call.1} parent=11 // pred_region
          _
        $region40: #{tpu_custom_call.1} parent=11 // pred_fallthru
          _
        // Predicated region
        $region41: #{tpu_custom_call.1} parent=11 // pred_check
          %p274 = pneg %p212
        $region42: #{tpu_custom_call.1} parent=11 // pred_check_branch
          %276 = sbr.rel (%p274) target = $region44
        $region43: #{tpu_custom_call.1} parent=11 // pred_region
          _
        $region44: #{tpu_custom_call.1} parent=11 // pred_fallthru
          _
      $region12: #{tpu_custom_call.1} parent=5 // pred_fallthru
        _
      %p277 = scmp.lt.s32.totalorder %s18, 3
      // Predicated region
      $region45: #{tpu_custom_call.1} parent=5 // pred_check
        %p278 = pneg %p277
      $region46: #{tpu_custom_call.1} parent=5 // pred_check_branch
        %280 = sbr.rel (%p278) target = $region48
      $region47: #{tpu_custom_call.1} parent=5 // pred_region
        // Predicated region
        $region49: #{tpu_custom_call.1} parent=47 // pred_check
          %p281 = pneg %p38
        $region50: #{tpu_custom_call.1} parent=47 // pred_check_branch
          %283 = sbr.rel (%p281) target = $region52
        $region51: #{tpu_custom_call.1} parent=47 // pred_region
          %p284 = scmp.lt.s32.totalorder %s18, 2
          %s285 = scalar_select %p284, %s18, 2
          %s286 = smul.addr %s285, 2
          %s287 = scalar_lea.vmem %s0, %s286
        $region52: #{tpu_custom_call.1} parent=47 // pred_fallthru
          _
      $region48: #{tpu_custom_call.1} parent=5 // pred_fallthru
        _
      %p288 = scmp.le.s32.totalorder 1, %s18
      %p289 = scmp.lt.s32.totalorder %s18, 4
      %p290 = pnand %p288, %p289
      %p291 = pneg %p290
      // Predicated region
      $region53: #{tpu_custom_call.1} parent=5 // pred_check
        _
      $region54: #{tpu_custom_call.1} parent=5 // pred_check_branch
        %293 = sbr.rel (%p290) target = $region56
      $region55: #{tpu_custom_call.1} parent=5 // pred_region
        %s294 = ssub.s32 %s18, 1
        %p295 = scmp.lt.s32.totalorder %s23, 2
        %s296 = scalar_select %p295, %s23, 2
        %s297 = smul.addr %s296, 2
        %s298 = scalar_lea.vmem %s0, %s297
        %p299 = pneg %p44
        %p300 = pneg %p41
        %p301 = pneg %p65
        %p302 = pneg %p62
        %p303 = pneg %p86
        %p304 = pneg %p83
        %p305 = pneg %p107
        %p306 = pneg %p104
        %p307 = pneg %p128
        %p308 = pneg %p125
        %p309 = pneg %p149
        %p310 = pneg %p146
        %p311 = pneg %p170
        %p312 = pneg %p167
        %p313 = pneg %p191
        %p314 = pneg %p188
        %p315 = pneg %p212
        %p316 = pneg %p209
        %p317 = pneg %p238
        %p318 = pneg %p235
        %s319 = sand.u32 %s225, 1
        %s320 = scalar_lea.sflag [#allocation3], %s319
        %s321 = sand.u32 %s225, 1
        %s322 = smul.addr %s321, 2
        %s323 = scalar_lea.vmem [#allocation2], %s322
        %p324 = scmp.lt.s32.totalorder %s23, 2
        %s325 = scalar_select %p324, %s23, 2
        %s326 = smul.addr %s325, 2
        %s327 = scalar_lea.vmem %s0, %s326
        %v328 = vld [vmem:[%s1] sm:$0xff]
        %v329 = vld [vmem:[%s1 + $0x8] sm:$0xff]
        %v330 = vld [vmem:[%s1 + $0x10] sm:$0xff]
        %v331 = vld [vmem:[%s1 + $0x18] sm:$0xff]
        %v332 = vld [vmem:[%s1 + $0x20] sm:$0xff]
        %v333 = vld [vmem:[%s1 + $0x28] sm:$0xff]
        %v334 = vld [vmem:[%s1 + $0x30] sm:$0xff]
        %v335 = vld [vmem:[%s1 + $0x38] sm:$0xff]
        %v336 = vld [vmem:[%s327] sm:$0x3]
        %v337 = vld [vmem:[%s2] sm:$0xff]
        %v338 = vld [vmem:[%s2 + $0x8] sm:$0xff]
        %v339 = vld [vmem:[%s2 + $0x10] sm:$0xff]
        %v340 = vld [vmem:[%s2 + $0x18] sm:$0xff]
        %v341 = vld [vmem:[%s2 + $0x20] sm:$0xff]
        %v342 = vld [vmem:[%s2 + $0x28] sm:$0xff]
        %v343 = vld [vmem:[%s2 + $0x30] sm:$0xff]
        %v344 = vld [vmem:[%s2 + $0x38] sm:$0xff]
        %346 = vset.pattern.permute.xlu0 0
        %347 = vperm.xlu0 %346, %v337
        %v348 = vpop.permute.xlu0 %347
        %351 = vset.pattern.permute.xlu0 0
        %352 = vperm.xlu0 %351, %v338
        %v353 = vpop.permute.xlu0 %352
        %356 = vset.pattern.permute.xlu0 0
        %357 = vperm.xlu0 %356, %v339
        %v358 = vpop.permute.xlu0 %357
        %361 = vset.pattern.permute.xlu0 0
        %362 = vperm.xlu0 %361, %v340
        %v363 = vpop.permute.xlu0 %362
        %366 = vset.pattern.permute.xlu0 0
        %367 = vperm.xlu0 %366, %v341
        %v368 = vpop.permute.xlu0 %367
        %371 = vset.pattern.permute.xlu0 0
        %372 = vperm.xlu0 %371, %v342
        %v373 = vpop.permute.xlu0 %372
        %376 = vset.pattern.permute.xlu0 0
        %377 = vperm.xlu0 %376, %v343
        %v378 = vpop.permute.xlu0 %377
        %381 = vset.pattern.permute.xlu0 0
        %382 = vperm.xlu0 %381, %v344
        %v383 = vpop.permute.xlu0 %382
        %vm385 = vcmask 15360
        %v387 = vsel %vm385, %v328, 0
        %v390 = vsel %vm385, %v329, 0
        %v393 = vsel %vm385, %v330, 0
        %v396 = vsel %vm385, %v331, 0
        %v399 = vsel %vm385, %v332, 0
        %v402 = vsel %vm385, %v333, 0
        %v405 = vsel %vm385, %v334, 0
        %v408 = vsel %vm385, %v335, 0
        %vm410 = vcmask 1041408
        %v412 = vsel %vm410, %v336, 0
        %414 = vmatprep.subr.mxu0 0.0
        %415 = vmatpush1.msra.mxu0 %v412
        %416 = vmatprep.subr.mxu0 0.0
        %417 = vmatpush1.msra.mxu0 0.0
        %418 = vmatprep.subr.mxu0 0.0
        %419 = vmatpush1.msra.mxu0 0.0
        %420 = vmatprep.subr.mxu0 0.0
        %421 = vmatpush1.msra.mxu0 0.0
        %422 = vmatprep.subr.mxu0 0.0
        %423 = vmatpush1.msra.mxu0 0.0
        %424 = vmatprep.subr.mxu0 0.0
        %425 = vmatpush1.msra.mxu0 0.0
        %426 = vmatprep.subr.mxu0 0.0
        %427 = vmatpush1.msra.mxu0 0.0
        %428 = vmatprep.subr.mxu0 0.0
        %429 = vmatpush1.msra.mxu0 0.0
        %430 = vmatprep.subr.mxu0 0.0
        %431 = vmatpush1.msra.mxu0 0.0
        %432 = vmatprep.subr.mxu0 0.0
        %433 = vmatpush1.msra.mxu0 0.0
        %434 = vmatprep.subr.mxu0 0.0
        %435 = vmatpush1.msra.mxu0 0.0
        %436 = vmatprep.subr.mxu0 0.0
        %437 = vmatpush1.msra.mxu0 0.0
        %438 = vmatprep.subr.mxu0 0.0
        %439 = vmatpush1.msra.mxu0 0.0
        %440 = vmatprep.subr.mxu0 0.0
        %441 = vmatpush1.msra.mxu0 0.0
        %442 = vmatprep.subr.mxu0 0.0
        %443 = vmatpush1.msra.mxu0 0.0
        %444 = vmatprep.subr.mxu0 0.0
        %445 = vmatpush1.msra.mxu0 0.0
        %446 = vmatprep.subr.mxu0 0.0
        %447 = vmatpush1.msra.mxu0 0.0
        %448 = vmatprep.subr.mxu0 0.0
        %449 = vmatpush1.msra.mxu0 0.0
        %450 = vmatprep.subr.mxu0 0.0
        %451 = vmatpush1.msra.mxu0 0.0
        %452 = vmatprep.subr.mxu0 0.0
        %453 = vmatpush1.msra.mxu0 0.0
        %454 = vmatprep.subr.mxu0 0.0
        %455 = vmatpush1.msra.mxu0 0.0
        %456 = vmatprep.subr.mxu0 0.0
        %457 = vmatpush1.msra.mxu0 0.0
        %458 = vmatprep.subr.mxu0 0.0
        %459 = vmatpush1.msra.mxu0 0.0
        %460 = vmatprep.subr.mxu0 0.0
        %461 = vmatpush1.msra.mxu0 0.0
        %462 = vmatprep.subr.mxu0 0.0
        %463 = vmatpush1.msra.mxu0 0.0
        %464 = vmatprep.subr.mxu0 0.0
        %465 = vmatpush1.msra.mxu0 0.0
        %466 = vmatprep.subr.mxu0 0.0
        %467 = vmatpush1.msra.mxu0 0.0
        %468 = vmatprep.subr.mxu0 0.0
        %469 = vmatpush1.msra.mxu0 0.0
        %470 = vmatprep.subr.mxu0 0.0
        %471 = vmatpush1.msra.mxu0 0.0
        %472 = vmatprep.subr.mxu0 0.0
        %473 = vmatpush1.msra.mxu0 0.0
        %474 = vmatprep.subr.mxu0 0.0
        %475 = vmatpush1.msra.mxu0 0.0
        %476 = vmatprep.subr.mxu0 0.0
        %477 = vmatpush1.msra.mxu0 0.0
        %478 = vmatprep.mubr.f32.mxu0 0.0
        %479 = vmatmul.mubr.f32.gmra.mrb[0].mxu0 %v387
        %v480 = vpop.f32.mrb[0].mxu0
        %v481 = vadd.f32 %v348, %v480
        %v482 = vpop.f32.mrb[0].mxu0
        %483 = vmatprep.mubr.f32.mxu0 0.0
        %484 = vmatmul.mubr.f32.gmra.mrb[0].mxu0 %v390
        %v485 = vpop.f32.mrb[0].mxu0
        %v486 = vadd.f32 %v353, %v485
        %v487 = vpop.f32.mrb[0].mxu0
        %488 = vmatprep.mubr.f32.mxu0 0.0
        %489 = vmatmul.mubr.f32.gmra.mrb[0].mxu0 %v393
        %v490 = vpop.f32.mrb[0].mxu0
        %v491 = vadd.f32 %v358, %v490
        %v492 = vpop.f32.mrb[0].mxu0
        %493 = vmatprep.mubr.f32.mxu0 0.0
        %494 = vmatmul.mubr.f32.gmra.mrb[0].mxu0 %v396
        %v495 = vpop.f32.mrb[0].mxu0
        %v496 = vadd.f32 %v363, %v495
        %v497 = vpop.f32.mrb[0].mxu0
        %498 = vmatprep.mubr.f32.mxu0 0.0
        %499 = vmatmul.mubr.f32.gmra.mrb[0].mxu0 %v399
        %v500 = vpop.f32.mrb[0].mxu0
        %v501 = vadd.f32 %v368, %v500
        %v502 = vpop.f32.mrb[0].mxu0
        %503 = vmatprep.mubr.f32.mxu0 0.0
        %504 = vmatmul.mubr.f32.gmra.mrb[0].mxu0 %v402
        %v505 = vpop.f32.mrb[0].mxu0
        %v506 = vadd.f32 %v373, %v505
        %v507 = vpop.f32.mrb[0].mxu0
        %508 = vmatprep.mubr.f32.mxu0 0.0
        %509 = vmatmul.mubr.f32.gmra.mrb[0].mxu0 %v405
        %v510 = vpop.f32.mrb[0].mxu0
        %v511 = vadd.f32 %v378, %v510
        %v512 = vpop.f32.mrb[0].mxu0
        %513 = vmatprep.mubr.f32.mxu0 0.0
        %514 = vmatmul.mubr.f32.gmra.mrb[0].mxu0 %v408
        %v515 = vpop.f32.mrb[0].mxu0
        %v516 = vadd.f32 %v383, %v515
        %v517 = vpop.f32.mrb[0].mxu0
        %518 = vdwg.mxu0
        %v519 = vtanh.pop %v481
        %v520 = vtanh.pop %v486
        %v521 = vtanh.pop %v491
        %v522 = vtanh.pop %v496
        %v523 = vtanh.pop %v501
        %v524 = vtanh.pop %v506
        %v525 = vtanh.pop %v511
        %v526 = vtanh.pop %v516
        %v527 = vld [vmem:[%s3] sm:$0xff]
        %v528 = vld [vmem:[%s3 + $0x8] sm:$0xff]
        %v529 = vld [vmem:[%s3 + $0x10] sm:$0xff]
        %v530 = vld [vmem:[%s3 + $0x18] sm:$0xff]
        %v531 = vld [vmem:[%s3 + $0x20] sm:$0xff]
        %v532 = vld [vmem:[%s3 + $0x28] sm:$0xff]
        %v533 = vld [vmem:[%s3 + $0x30] sm:$0xff]
        %v534 = vld [vmem:[%s3 + $0x38] sm:$0xff]
        %v535 = vld [vmem:[%s4] sm:$0xff]
        %v536 = vld [vmem:[%s4 + $0x8] sm:$0xff]
        %v537 = vld [vmem:[%s4 + $0x10] sm:$0xff]
        %v538 = vld [vmem:[%s4 + $0x18] sm:$0xff]
        %v539 = vld [vmem:[%s4 + $0x20] sm:$0xff]
        %v540 = vld [vmem:[%s4 + $0x28] sm:$0xff]
        %v541 = vld [vmem:[%s4 + $0x30] sm:$0xff]
        %v542 = vld [vmem:[%s4 + $0x38] sm:$0xff]
        %544 = vset.pattern.permute.xlu0 0
        %545 = vperm.xlu0 %544, %v535
        %v546 = vpop.permute.xlu0 %545
        %549 = vset.pattern.permute.xlu0 0
        %550 = vperm.xlu0 %549, %v536
        %v551 = vpop.permute.xlu0 %550
        %554 = vset.pattern.permute.xlu0 0
        %555 = vperm.xlu0 %554, %v537
        %v556 = vpop.permute.xlu0 %555
        %559 = vset.pattern.permute.xlu0 0
        %560 = vperm.xlu0 %559, %v538
        %v561 = vpop.permute.xlu0 %560
        %564 = vset.pattern.permute.xlu0 0
        %565 = vperm.xlu0 %564, %v539
        %v566 = vpop.permute.xlu0 %565
        %569 = vset.pattern.permute.xlu0 0
        %570 = vperm.xlu0 %569, %v540
        %v571 = vpop.permute.xlu0 %570
        %574 = vset.pattern.permute.xlu0 0
        %575 = vperm.xlu0 %574, %v541
        %v576 = vpop.permute.xlu0 %575
        %579 = vset.pattern.permute.xlu0 0
        %580 = vperm.xlu0 %579, %v542
        %v581 = vpop.permute.xlu0 %580
        %vm583 = vcmask 523264
        %v585 = vsel %vm583, %v527, 0
        %v588 = vsel %vm583, %v528, 0
        %v591 = vsel %vm583, %v529, 0
        %v594 = vsel %vm583, %v530, 0
        %v597 = vsel %vm583, %v531, 0
        %v600 = vsel %vm583, %v532, 0
        %v603 = vsel %vm583, %v533, 0
        %v606 = vsel %vm583, %v534, 0
        %608 = vmatprep.subr.mxu0 0.0
        %609 = vmatpush1.msra.mxu0 %v519
        %610 = vmatprep.subr.mxu0 0.0
        %611 = vmatpush1.msra.mxu0 %v520
        %612 = vmatprep.subr.mxu0 0.0
        %613 = vmatpush1.msra.mxu0 %v521
        %614 = vmatprep.subr.mxu0 0.0
        %615 = vmatpush1.msra.mxu0 %v522
        %616 = vmatprep.subr.mxu0 0.0
        %617 = vmatpush1.msra.mxu0 %v523
        %618 = vmatprep.subr.mxu0 0.0
        %619 = vmatpush1.msra.mxu0 %v524
        %620 = vmatprep.subr.mxu0 0.0
        %621 = vmatpush1.msra.mxu0 %v525
        %622 = vmatprep.subr.mxu0 0.0
        %623 = vmatpush1.msra.mxu0 %v526
        %624 = vmatprep.subr.mxu0 0.0
        %625 = vmatpush1.msra.mxu0 0.0
        %626 = vmatprep.subr.mxu0 0.0
        %627 = vmatpush1.msra.mxu0 0.0
        %628 = vmatprep.subr.mxu0 0.0
        %629 = vmatpush1.msra.mxu0 0.0
        %630 = vmatprep.subr.mxu0 0.0
        %631 = vmatpush1.msra.mxu0 0.0
        %632 = vmatprep.subr.mxu0 0.0
        %633 = vmatpush1.msra.mxu0 0.0
        %634 = vmatprep.subr.mxu0 0.0
        %635 = vmatpush1.msra.mxu0 0.0
        %636 = vmatprep.subr.mxu0 0.0
        %637 = vmatpush1.msra.mxu0 0.0
        %638 = vmatprep.subr.mxu0 0.0
        %639 = vmatpush1.msra.mxu0 0.0
        %640 = vmatprep.subr.mxu0 0.0
        %641 = vmatpush1.msra.mxu0 0.0
        %642 = vmatprep.subr.mxu0 0.0
        %643 = vmatpush1.msra.mxu0 0.0
        %644 = vmatprep.subr.mxu0 0.0
        %645 = vmatpush1.msra.mxu0 0.0
        %646 = vmatprep.subr.mxu0 0.0
        %647 = vmatpush1.msra.mxu0 0.0
        %648 = vmatprep.subr.mxu0 0.0
        %649 = vmatpush1.msra.mxu0 0.0
        %650 = vmatprep.subr.mxu0 0.0
        %651 = vmatpush1.msra.mxu0 0.0
        %652 = vmatprep.subr.mxu0 0.0
        %653 = vmatpush1.msra.mxu0 0.0
        %654 = vmatprep.subr.mxu0 0.0
        %655 = vmatpush1.msra.mxu0 0.0
        %656 = vmatprep.subr.mxu0 0.0
        %657 = vmatpush1.msra.mxu0 0.0
        %658 = vmatprep.subr.mxu0 0.0
        %659 = vmatpush1.msra.mxu0 0.0
        %660 = vmatprep.subr.mxu0 0.0
        %661 = vmatpush1.msra.mxu0 0.0
        %662 = vmatprep.subr.mxu0 0.0
        %663 = vmatpush1.msra.mxu0 0.0
        %664 = vmatprep.subr.mxu0 0.0
        %665 = vmatpush1.msra.mxu0 0.0
        %666 = vmatprep.subr.mxu0 0.0
        %667 = vmatpush1.msra.mxu0 0.0
        %668 = vmatprep.subr.mxu0 0.0
        %669 = vmatpush1.msra.mxu0 0.0
        %670 = vmatprep.subr.mxu0 0.0
        %671 = vmatpush1.msra.mxu0 0.0
        %672 = vmatprep.mubr.f32.mxu0 0.0
        %673 = vmatmul.mubr.f32.gmra.mrb[0].mxu0 %v585
        %v674 = vpop.f32.mrb[0].mxu0
        %v675 = vadd.f32 %v546, %v674
        %v676 = vpop.f32.mrb[0].mxu0
        %677 = vmatprep.mubr.f32.mxu0 0.0
        %678 = vmatmul.mubr.f32.gmra.mrb[0].mxu0 %v588
        %v679 = vpop.f32.mrb[0].mxu0
        %v680 = vadd.f32 %v551, %v679
        %v681 = vpop.f32.mrb[0].mxu0
        %682 = vmatprep.mubr.f32.mxu0 0.0
        %683 = vmatmul.mubr.f32.gmra.mrb[0].mxu0 %v591
        %v684 = vpop.f32.mrb[0].mxu0
        %v685 = vadd.f32 %v556, %v684
        %v686 = vpop.f32.mrb[0].mxu0
        %687 = vmatprep.mubr.f32.mxu0 0.0
        %688 = vmatmul.mubr.f32.gmra.mrb[0].mxu0 %v594
        %v689 = vpop.f32.mrb[0].mxu0
        %v690 = vadd.f32 %v561, %v689
        %v691 = vpop.f32.mrb[0].mxu0
        %692 = vmatprep.mubr.f32.mxu0 0.0
        %693 = vmatmul.mubr.f32.gmra.mrb[0].mxu0 %v597
        %v694 = vpop.f32.mrb[0].mxu0
        %v695 = vadd.f32 %v566, %v694
        %v696 = vpop.f32.mrb[0].mxu0
        %697 = vmatprep.mubr.f32.mxu0 0.0
        %698 = vmatmul.mubr.f32.gmra.mrb[0].mxu0 %v600
        %v699 = vpop.f32.mrb[0].mxu0
        %v700 = vadd.f32 %v571, %v699
        %v701 = vpop.f32.mrb[0].mxu0
        %702 = vmatprep.mubr.f32.mxu0 0.0
        %703 = vmatmul.mubr.f32.gmra.mrb[0].mxu0 %v603
        %v704 = vpop.f32.mrb[0].mxu0
        %v705 = vadd.f32 %v576, %v704
        %v706 = vpop.f32.mrb[0].mxu0
        %707 = vmatprep.mubr.f32.mxu0 0.0
        %708 = vmatmul.mubr.f32.gmra.mrb[0].mxu0 %v606
        %v709 = vpop.f32.mrb[0].mxu0
        %v710 = vadd.f32 %v581, %v709
        %v711 = vpop.f32.mrb[0].mxu0
        %712 = vdwg.mxu0
        %v713 = vtanh.pop %v675
        %v714 = vtanh.pop %v680
        %v715 = vtanh.pop %v685
        %v716 = vtanh.pop %v690
        %v717 = vtanh.pop %v695
        %v718 = vtanh.pop %v700
        %v719 = vtanh.pop %v705
        %v720 = vtanh.pop %v710
        %v721 = vld [vmem:[%s5] sm:$0xff]
        %v722 = vld [vmem:[%s5 + $0x8] sm:$0xff]
        %v723 = vld [vmem:[%s5 + $0x10] sm:$0xff]
        %v724 = vld [vmem:[%s5 + $0x18] sm:$0xff]
        %v725 = vld [vmem:[%s5 + $0x20] sm:$0xff]
        %v726 = vld [vmem:[%s5 + $0x28] sm:$0xff]
        %v727 = vld [vmem:[%s5 + $0x30] sm:$0xff]
        %v728 = vld [vmem:[%s5 + $0x38] sm:$0xff]
        %v729 = vld [vmem:[%s6] sm:$0xff]
        %v730 = vld [vmem:[%s6 + $0x8] sm:$0xff]
        %v731 = vld [vmem:[%s6 + $0x10] sm:$0xff]
        %v732 = vld [vmem:[%s6 + $0x18] sm:$0xff]
        %v733 = vld [vmem:[%s6 + $0x20] sm:$0xff]
        %v734 = vld [vmem:[%s6 + $0x28] sm:$0xff]
        %v735 = vld [vmem:[%s6 + $0x30] sm:$0xff]
        %v736 = vld [vmem:[%s6 + $0x38] sm:$0xff]
        %738 = vset.pattern.permute.xlu0 0
        %739 = vperm.xlu0 %738, %v729
        %v740 = vpop.permute.xlu0 %739
        %743 = vset.pattern.permute.xlu0 0
        %744 = vperm.xlu0 %743, %v730
        %v745 = vpop.permute.xlu0 %744
        %748 = vset.pattern.permute.xlu0 0
        %749 = vperm.xlu0 %748, %v731
        %v750 = vpop.permute.xlu0 %749
        %753 = vset.pattern.permute.xlu0 0
        %754 = vperm.xlu0 %753, %v732
        %v755 = vpop.permute.xlu0 %754
        %758 = vset.pattern.permute.xlu0 0
        %759 = vperm.xlu0 %758, %v733
        %v760 = vpop.permute.xlu0 %759
        %763 = vset.pattern.permute.xlu0 0
        %764 = vperm.xlu0 %763, %v734
        %v765 = vpop.permute.xlu0 %764
        %768 = vset.pattern.permute.xlu0 0
        %769 = vperm.xlu0 %768, %v735
        %v770 = vpop.permute.xlu0 %769
        %773 = vset.pattern.permute.xlu0 0
        %774 = vperm.xlu0 %773, %v736
        %v775 = vpop.permute.xlu0 %774
        %v778 = vsel %vm583, %v721, 0
        %v781 = vsel %vm583, %v722, 0
        %v784 = vsel %vm583, %v723, 0
        %v787 = vsel %vm583, %v724, 0
        %v790 = vsel %vm583, %v725, 0
        %v793 = vsel %vm583, %v726, 0
        %v796 = vsel %vm583, %v727, 0
        %v799 = vsel %vm583, %v728, 0
        %801 = vmatprep.subr.mxu0 0.0
        %802 = vmatpush1.msra.mxu0 %v713
        %803 = vmatprep.subr.mxu0 0.0
        %804 = vmatpush1.msra.mxu0 %v714
        %805 = vmatprep.subr.mxu0 0.0
        %806 = vmatpush1.msra.mxu0 %v715
        %807 = vmatprep.subr.mxu0 0.0
        %808 = vmatpush1.msra.mxu0 %v716
        %809 = vmatprep.subr.mxu0 0.0
        %810 = vmatpush1.msra.mxu0 %v717
        %811 = vmatprep.subr.mxu0 0.0
        %812 = vmatpush1.msra.mxu0 %v718
        %813 = vmatprep.subr.mxu0 0.0
        %814 = vmatpush1.msra.mxu0 %v719
        %815 = vmatprep.subr.mxu0 0.0
        %816 = vmatpush1.msra.mxu0 %v720
        %817 = vmatprep.subr.mxu0 0.0
        %818 = vmatpush1.msra.mxu0 0.0
        %819 = vmatprep.subr.mxu0 0.0
        %820 = vmatpush1.msra.mxu0 0.0
        %821 = vmatprep.subr.mxu0 0.0
        %822 = vmatpush1.msra.mxu0 0.0
        %823 = vmatprep.subr.mxu0 0.0
        %824 = vmatpush1.msra.mxu0 0.0
        %825 = vmatprep.subr.mxu0 0.0
        %826 = vmatpush1.msra.mxu0 0.0
        %827 = vmatprep.subr.mxu0 0.0
        %828 = vmatpush1.msra.mxu0 0.0
        %829 = vmatprep.subr.mxu0 0.0
        %830 = vmatpush1.msra.mxu0 0.0
        %831 = vmatprep.subr.mxu0 0.0
        %832 = vmatpush1.msra.mxu0 0.0
        %833 = vmatprep.subr.mxu0 0.0
        %834 = vmatpush1.msra.mxu0 0.0
        %835 = vmatprep.subr.mxu0 0.0
        %836 = vmatpush1.msra.mxu0 0.0
        %837 = vmatprep.subr.mxu0 0.0
        %838 = vmatpush1.msra.mxu0 0.0
        %839 = vmatprep.subr.mxu0 0.0
        %840 = vmatpush1.msra.mxu0 0.0
        %841 = vmatprep.subr.mxu0 0.0
        %842 = vmatpush1.msra.mxu0 0.0
        %843 = vmatprep.subr.mxu0 0.0
        %844 = vmatpush1.msra.mxu0 0.0
        %845 = vmatprep.subr.mxu0 0.0
        %846 = vmatpush1.msra.mxu0 0.0
        %847 = vmatprep.subr.mxu0 0.0
        %848 = vmatpush1.msra.mxu0 0.0
        %849 = vmatprep.subr.mxu0 0.0
        %850 = vmatpush1.msra.mxu0 0.0
        %851 = vmatprep.subr.mxu0 0.0
        %852 = vmatpush1.msra.mxu0 0.0
        %853 = vmatprep.subr.mxu0 0.0
        %854 = vmatpush1.msra.mxu0 0.0
        %855 = vmatprep.subr.mxu0 0.0
        %856 = vmatpush1.msra.mxu0 0.0
        %857 = vmatprep.subr.mxu0 0.0
        %858 = vmatpush1.msra.mxu0 0.0
        %859 = vmatprep.subr.mxu0 0.0
        %860 = vmatpush1.msra.mxu0 0.0
        %861 = vmatprep.subr.mxu0 0.0
        %862 = vmatpush1.msra.mxu0 0.0
        %863 = vmatprep.subr.mxu0 0.0
        %864 = vmatpush1.msra.mxu0 0.0
        %865 = vmatprep.mubr.f32.mxu0 0.0
        %866 = vmatmul.mubr.f32.gmra.mrb[0].mxu0 %v778
        %v867 = vpop.f32.mrb[0].mxu0
        %v868 = vadd.f32 %v740, %v867
        %v869 = vpop.f32.mrb[0].mxu0
        %870 = vmatprep.mubr.f32.mxu0 0.0
        %871 = vmatmul.mubr.f32.gmra.mrb[0].mxu0 %v781
        %v872 = vpop.f32.mrb[0].mxu0
        %v873 = vadd.f32 %v745, %v872
        %v874 = vpop.f32.mrb[0].mxu0
        %875 = vmatprep.mubr.f32.mxu0 0.0
        %876 = vmatmul.mubr.f32.gmra.mrb[0].mxu0 %v784
        %v877 = vpop.f32.mrb[0].mxu0
        %v878 = vadd.f32 %v750, %v877
        %v879 = vpop.f32.mrb[0].mxu0
        %880 = vmatprep.mubr.f32.mxu0 0.0
        %881 = vmatmul.mubr.f32.gmra.mrb[0].mxu0 %v787
        %v882 = vpop.f32.mrb[0].mxu0
        %v883 = vadd.f32 %v755, %v882
        %v884 = vpop.f32.mrb[0].mxu0
        %885 = vmatprep.mubr.f32.mxu0 0.0
        %886 = vmatmul.mubr.f32.gmra.mrb[0].mxu0 %v790
        %v887 = vpop.f32.mrb[0].mxu0
        %v888 = vadd.f32 %v760, %v887
        %v889 = vpop.f32.mrb[0].mxu0
        %890 = vmatprep.mubr.f32.mxu0 0.0
        %891 = vmatmul.mubr.f32.gmra.mrb[0].mxu0 %v793
        %v892 = vpop.f32.mrb[0].mxu0
        %v893 = vadd.f32 %v765, %v892
        %v894 = vpop.f32.mrb[0].mxu0
        %895 = vmatprep.mubr.f32.mxu0 0.0
        %896 = vmatmul.mubr.f32.gmra.mrb[0].mxu0 %v796
        %v897 = vpop.f32.mrb[0].mxu0
        %v898 = vadd.f32 %v770, %v897
        %v899 = vpop.f32.mrb[0].mxu0
        %900 = vmatprep.mubr.f32.mxu0 0.0
        %901 = vmatmul.mubr.f32.gmra.mrb[0].mxu0 %v799
        %v902 = vpop.f32.mrb[0].mxu0
        %v903 = vadd.f32 %v775, %v902
        %v904 = vpop.f32.mrb[0].mxu0
        %905 = vdwg.mxu0
        %v906 = vtanh.pop %v868
        %v907 = vtanh.pop %v873
        %v908 = vtanh.pop %v878
        %v909 = vtanh.pop %v883
        %v910 = vtanh.pop %v888
        %v911 = vtanh.pop %v893
        %v912 = vtanh.pop %v898
        %v913 = vtanh.pop %v903
        %v914 = vld [vmem:[%s7] sm:$0x3]
        %v915 = vld [vmem:[%s8] sm:$0x3]
        %917 = vset.pattern.permute.xlu0 0
        %918 = vperm.xlu0 %917, %v915
        %v919 = vpop.permute.xlu0 %918
        %v922 = vsel %vm583, %v914, 0
        %924 = vmatprep.subr.mxu0 0.0
        %925 = vmatpush1.msra.mxu0 %v906
        %926 = vmatprep.subr.mxu0 0.0
        %927 = vmatpush1.msra.mxu0 %v907
        %928 = vmatprep.subr.mxu0 0.0
        %929 = vmatpush1.msra.mxu0 %v908
        %930 = vmatprep.subr.mxu0 0.0
        %931 = vmatpush1.msra.mxu0 %v909
        %932 = vmatprep.subr.mxu0 0.0
        %933 = vmatpush1.msra.mxu0 %v910
        %934 = vmatprep.subr.mxu0 0.0
        %935 = vmatpush1.msra.mxu0 %v911
        %936 = vmatprep.subr.mxu0 0.0
        %937 = vmatpush1.msra.mxu0 %v912
        %938 = vmatprep.subr.mxu0 0.0
        %939 = vmatpush1.msra.mxu0 %v913
        %940 = vmatprep.subr.mxu0 0.0
        %941 = vmatpush1.msra.mxu0 0.0
        %942 = vmatprep.subr.mxu0 0.0
        %943 = vmatpush1.msra.mxu0 0.0
        %944 = vmatprep.subr.mxu0 0.0
        %945 = vmatpush1.msra.mxu0 0.0
        %946 = vmatprep.subr.mxu0 0.0
        %947 = vmatpush1.msra.mxu0 0.0
        %948 = vmatprep.subr.mxu0 0.0
        %949 = vmatpush1.msra.mxu0 0.0
        %950 = vmatprep.subr.mxu0 0.0
        %951 = vmatpush1.msra.mxu0 0.0
        %952 = vmatprep.subr.mxu0 0.0
        %953 = vmatpush1.msra.mxu0 0.0
        %954 = vmatprep.subr.mxu0 0.0
        %955 = vmatpush1.msra.mxu0 0.0
        %956 = vmatprep.subr.mxu0 0.0
        %957 = vmatpush1.msra.mxu0 0.0
        %958 = vmatprep.subr.mxu0 0.0
        %959 = vmatpush1.msra.mxu0 0.0
        %960 = vmatprep.subr.mxu0 0.0
        %961 = vmatpush1.msra.mxu0 0.0
        %962 = vmatprep.subr.mxu0 0.0
        %963 = vmatpush1.msra.mxu0 0.0
        %964 = vmatprep.subr.mxu0 0.0
        %965 = vmatpush1.msra.mxu0 0.0
        %966 = vmatprep.subr.mxu0 0.0
        %967 = vmatpush1.msra.mxu0 0.0
        %968 = vmatprep.subr.mxu0 0.0
        %969 = vmatpush1.msra.mxu0 0.0
        %970 = vmatprep.subr.mxu0 0.0
        %971 = vmatpush1.msra.mxu0 0.0
        %972 = vmatprep.subr.mxu0 0.0
        %973 = vmatpush1.msra.mxu0 0.0
        %974 = vmatprep.subr.mxu0 0.0
        %975 = vmatpush1.msra.mxu0 0.0
        %976 = vmatprep.subr.mxu0 0.0
        %977 = vmatpush1.msra.mxu0 0.0
        %978 = vmatprep.subr.mxu0 0.0
        %979 = vmatpush1.msra.mxu0 0.0
        %980 = vmatprep.subr.mxu0 0.0
        %981 = vmatpush1.msra.mxu0 0.0
        %982 = vmatprep.subr.mxu0 0.0
        %983 = vmatpush1.msra.mxu0 0.0
        %984 = vmatprep.subr.mxu0 0.0
        %985 = vmatpush1.msra.mxu0 0.0
        %986 = vmatprep.subr.mxu0 0.0
        %987 = vmatpush1.msra.mxu0 0.0
        %988 = vmatprep.mubr.f32.mxu0 0.0
        %989 = vmatmul.mubr.f32.gmra.mrb[0].mxu0 %v922
        %v990 = vpop.f32.mrb[0].mxu0
        %v991 = vadd.f32 %v919, %v990
        %v992 = vpop.f32.mrb[0].mxu0
        %993 = vdwg.mxu0
        %994 = vst [vmem:[%s323] sm:$0x3] %v991
        %s995 = sand.u32 %s225, 1
        %s996 = scalar_lea.sflag [#allocation3], %s995
        %s997 = sand.u32 %s225, 1
        %s998 = smul.addr %s997, 2
        %s999 = scalar_lea.vmem [#allocation2], %s998
        // Predicated region
        $region57: #{tpu_custom_call.1} parent=55 // pred_check
          %p1000 = pneg %p235
        $region58: #{tpu_custom_call.1} parent=55 // pred_check_branch
          %1002 = sbr.rel (%p1000) target = $region60
        $region59: #{tpu_custom_call.1} parent=55 // pred_region
          %s1004 = ssub.s32 32, 32
          %1005 = vsyncadd %s996, %s1004
          %s1006 = smul.addr %s23, 32
          %s1007 = scalar_lea.hbm %s9, %s1006
          %s1009 = sshll.u32 %s999, 4
          %s1010 = int_to_ptr.vmem [resolvable:$true] %s1009
          %1012 = dma.vmem_to_hbm [thread:$0]  %s1010, 32, %s1007, %s996
        $region60: #{tpu_custom_call.1} parent=55 // pred_fallthru
          _
      $region56: #{tpu_custom_call.1} parent=5 // pred_fallthru
        _
      %p1013 = scmp.le.s32.totalorder 2, %s18
      // Predicated region
      $region61: #{tpu_custom_call.1} parent=5 // pred_check
        %p1014 = pneg %p1013
      $region62: #{tpu_custom_call.1} parent=5 // pred_check_branch
        %1016 = sbr.rel (%p1014) target = $region64
      $region63: #{tpu_custom_call.1} parent=5 // pred_region
        %s1017 = ssub.s32 %s18, 2
        // Predicated region
        $region65: #{tpu_custom_call.1} parent=63 // pred_check
          %p1018 = pneg %p241
        $region66: #{tpu_custom_call.1} parent=63 // pred_check_branch
          %1020 = sbr.rel (%p1018) target = $region68
        $region67: #{tpu_custom_call.1} parent=63 // pred_region
          %s1021 = sand.u32 %s226, 1
          %s1022 = scalar_lea.sflag [#allocation3], %s1021
          %s1023 = sand.u32 %s226, 1
          %s1024 = smul.addr %s1023, 2
          %s1025 = scalar_lea.vmem [#allocation2], %s1024
          %1026 = dma.done %s1022, 32
        $region68: #{tpu_custom_call.1} parent=63 // pred_fallthru
          _
      $region64: #{tpu_custom_call.1} parent=5 // pred_fallthru
        _
    $region6: #{tpu_custom_call.1} parent=1 // loop_footer
      %s22 = sadd.s32 1, %s18
    $region7: #{tpu_custom_call.1} parent=1 // loop_footer_branch
      %17 = sbr.rel target = $region3
    $region8: #{tpu_custom_call.1} parent=1 // loop_exit
      _
    %1027 = vsyncpa [#allocation3], 1
    %s1028 = scalar_lea.sflag [#allocation3], 1
    %1029 = vsyncpa %s1028, 1

</llo_original>
